<compile_context>
chip_gen: v7x
topology: tpu7x:2x2x1
jax: 0.10.0
libtpu: 0.0.40
codegen_flags: <defaults>
</compile_context>

<pallas_src>
import jax
import jax.numpy as jnp
from jax.experimental import pallas as pl
from jax.experimental.pallas import tpu as pltpu

# torch.distributions.utils.clamp_probs eps for float32
_CLAMP_EPS = 1.1920929e-07

# Per-output-block VMEM budget (bytes). Conservative enough that the
# double-buffered output + inputs fit comfortably inside the scoped VMEM
# limit on v5e/v6e/v7x alike.
_BLOCK_BUDGET_BYTES = 4 << 20
_VMEM_LIMIT_BYTES = 48 << 20


def bernoulli_leaf_kernel(x_ref, p_ref, m_ref, z_ref):
    # x_ref: (B_blk, VC)   p_ref: (T_blk, VC)   m_ref: (1, VC)
    # z_ref: (B_blk, T_blk, VC)
    x = x_ref[...]                                      # (B_blk, VC)
    p = p_ref[...]                                      # (T_blk, VC)
    keep = m_ref[...] > 0.5                             # (1, VC) bool

    p = jnp.clip(p, _CLAMP_EPS, 1.0 - _CLAMP_EPS)       # mimic torch clamp_probs
    logp = jnp.log(p)                                   # (T_blk, VC)  (EUP)
    log1mp = jnp.log1p(-p)                              # (T_blk, VC)  (EUP)

    xb = x[:, None, :] > 0.5                            # (B_blk, 1, VC) bool
    lp = jnp.where(xb, logp[None], log1mp[None])        # (B_blk, T_blk, VC)
    z_ref[...] = jnp.where(keep[None], lp, 0.0)


def _choose_block(dim, limit, align=8):
    """Largest block <= ~limit that is either the full extent or a multiple of `align`."""
    if dim <= limit:
        return dim                      # full extent -> always layout-legal
    return max((limit // align) * align, align)


def bernoulli_leaf_forward(x, p, marginalize):
    """x: (B, V) float32; p: (T, V, C) float32; marginalize: (V,) bool -> (B, T, V, C) f32."""
    B, V = x.shape
    T, Vp, C = p.shape
    assert V == Vp
    VC = V * C

    # Lane-dense operands: flatten (V, C) -> VC on the trailing axis.
    p_flat = p.reshape(T, VC)                                        # (T, VC)
    x_flat = jnp.repeat(x.astype(jnp.float32), C, axis=-1)           # (B, VC)
    mask_flat = jnp.repeat((~marginalize).astype(jnp.float32), C)    # (VC,)
    mask_flat = mask_flat.reshape(1, VC)

    # Tile sizes: keep each output block within the VMEM budget.
    bytes_per = 4
    max_rows = max(1, _BLOCK_BUDGET_BYTES // (VC * bytes_per))       # B_blk * T_blk cap
    t_blk = _choose_block(T, max(1, min(T, max_rows)))
    max_b = max(1, _BLOCK_BUDGET_BYTES // (t_blk * VC * bytes_per))
    b_blk = _choose_block(B, max(1, min(B, max_b)))

    grid = (pl.cdiv(B, b_blk), pl.cdiv(T, t_blk))                    # (b outer, t inner)

    out_flat = pl.pallas_call(
        bernoulli_leaf_kernel,
        out_shape=jax.ShapeDtypeStruct((B, T, VC), jnp.float32),
        grid_spec=pltpu.PrefetchScalarGridSpec(
            num_scalar_prefetch=0,
            grid=grid,
            in_specs=[
                pl.BlockSpec((b_blk, VC), lambda b, t: (b, 0)),      # x: resident across t
                pl.BlockSpec((t_blk, VC), lambda b, t: (t, 0)),      # p: streams per t
                pl.BlockSpec((1, VC), lambda b, t: (0, 0)),          # mask: resident
            ],
            out_specs=pl.BlockSpec((b_blk, t_blk, VC), lambda b, t: (b, t, 0)),
        ),
        compiler_params=pltpu.CompilerParams(
            dimension_semantics=("parallel", "parallel"),
            vmem_limit_bytes=_VMEM_LIMIT_BYTES,
        ),
    )(x_flat, p_flat, mask_flat)

    # Contiguous reshape back to (B, T, V, C) — free.
    return out_flat.reshape(B, T, V, C)


if __name__ == "__main__":
    # Small shapes consistent with the module: tracks T, variables V, channels C.
    B, T, V, C = 2, 3, 16, 8

    key = jax.random.PRNGKey(0)
    kx, kp = jax.random.split(key)

    # Binary observations, like Bernoulli data.
    x = (jax.random.uniform(kx, (B, V)) > 0.5).astype(jnp.float32)
    # Deterministic parameter init (torch.rand equivalent: uniform in (0, 1)).
    p = jax.random.uniform(kp, (T, V, C), dtype=jnp.float32)
    # Default buffer: no variables marginalized.
    marginalize = jnp.zeros((V,), dtype=bool)

    z = bernoulli_leaf_forward(x, p, marginalize)
    z = jax.block_until_ready(z)

    # Pure-JAX reference check of the forward semantics.
    pc = jnp.clip(p, _CLAMP_EPS, 1.0 - _CLAMP_EPS)
    ref = (x[:, None, :, None] * jnp.log(pc)[None]
           + (1.0 - x[:, None, :, None]) * jnp.log1p(-pc)[None])
    ref = ref * (~marginalize).astype(jnp.float32)[None, None, :, None]
    assert z.shape == (B, T, V, C)
    assert jnp.allclose(z, ref, atol=1e-5, rtol=1e-5)

    print("KERNEL_OK")
</pallas_src>

<mosaic_0001>
module attributes {stable_mosaic.version = 11 : i64} {
  func.func @bernoulli_leaf_kernel(%arg0: i32, %arg1: i32, %arg2: memref<2x128xf32, #tpu.memory_space<vmem>>, %arg3: memref<3x128xf32, #tpu.memory_space<vmem>>, %arg4: memref<1x128xf32, #tpu.memory_space<vmem>>, %arg5: memref<2x3x128xf32, #tpu.memory_space<vmem>>) attributes {dimension_semantics = [#tpu.dimension_semantics<parallel>, #tpu.dimension_semantics<parallel>], iteration_bounds = array<i64: 1, 1>, scalar_prefetch = 0 : i64, scratch_operands = 0 : i64, tpu.core_type = #tpu.core_type<tc>, window_params = [{transform_indices = @transform_0, window_bounds = array<i64: 2, 128>}, {transform_indices = @transform_1, window_bounds = array<i64: 3, 128>}, {pipeline_mode = #tpu.pipeline_mode<synchronous>, transform_indices = @transform_2, window_bounds = array<i64: 1, 128>}, {transform_indices = @transform_3, window_bounds = array<i64: 2, 3, 128>}]} {
    %c0 = arith.constant 0 : index
    %c0_0 = arith.constant 0 : index
    %0 = vector.load %arg2[%c0, %c0_0] : memref<2x128xf32, #tpu.memory_space<vmem>>, vector<2x128xf32>
    %c0_1 = arith.constant 0 : index
    %c0_2 = arith.constant 0 : index
    %1 = vector.load %arg3[%c0_1, %c0_2] : memref<3x128xf32, #tpu.memory_space<vmem>>, vector<3x128xf32>
    %c0_3 = arith.constant 0 : index
    %c0_4 = arith.constant 0 : index
    %2 = vector.load %arg4[%c0_3, %c0_4] : memref<1x128xf32, #tpu.memory_space<vmem>>, vector<1x128xf32>
    %cst = arith.constant 5.000000e-01 : f32
    %3 = vector.broadcast %cst : f32 to vector<1x128xf32>
    %4 = arith.cmpf ogt, %2, %3 : vector<1x128xf32>
    %cst_5 = arith.constant 1.1920929E-7 : f32
    %cst_6 = arith.constant 0.99999988 : f32
    %5 = vector.broadcast %cst_5 : f32 to vector<3x128xf32>
    %6 = arith.maximumf %5, %1 : vector<3x128xf32>
    %7 = vector.broadcast %cst_6 : f32 to vector<3x128xf32>
    %8 = arith.minimumf %7, %6 : vector<3x128xf32>
    %9 = math.log %8 : vector<3x128xf32>
    %cst_7 = arith.constant 0.000000e+00 : f32
    %10 = vector.broadcast %cst_7 : f32 to vector<3x128xf32>
    %11 = arith.subf %10, %8 : vector<3x128xf32>
    %12 = math.log1p %11 : vector<3x128xf32>
    %13 = vector.shape_cast %0 : vector<2x128xf32> to vector<2x1x128xf32>
    %cst_8 = arith.constant 5.000000e-01 : f32
    %14 = vector.broadcast %cst_8 : f32 to vector<2x1x128xf32>
    %15 = arith.cmpf ogt, %13, %14 : vector<2x1x128xf32>
    %16 = vector.shape_cast %9 : vector<3x128xf32> to vector<1x3x128xf32>
    %17 = vector.shape_cast %12 : vector<3x128xf32> to vector<1x3x128xf32>
    %18 = vector.shape_cast %15 : vector<2x1x128xi1> to vector<2x1x128xi1>
    %19 = vector.broadcast %18 : vector<2x1x128xi1> to vector<2x3x128xi1>
    %20 = vector.shape_cast %16 : vector<1x3x128xf32> to vector<1x3x128xf32>
    %21 = vector.broadcast %20 : vector<1x3x128xf32> to vector<2x3x128xf32>
    %22 = vector.shape_cast %17 : vector<1x3x128xf32> to vector<1x3x128xf32>
    %23 = vector.broadcast %22 : vector<1x3x128xf32> to vector<2x3x128xf32>
    %24 = arith.select %19, %21, %23 : vector<2x3x128xi1>, vector<2x3x128xf32>
    %25 = vector.shape_cast %4 : vector<1x128xi1> to vector<1x1x128xi1>
    %cst_9 = arith.constant 0.000000e+00 : f32
    %26 = vector.shape_cast %25 : vector<1x1x128xi1> to vector<1x1x128xi1>
    %27 = vector.broadcast %26 : vector<1x1x128xi1> to vector<2x3x128xi1>
    %28 = vector.broadcast %cst_9 : f32 to vector<2x3x128xf32>
    %29 = arith.select %27, %24, %28 : vector<2x3x128xi1>, vector<2x3x128xf32>
    %c0_10 = arith.constant 0 : index
    %c0_11 = arith.constant 0 : index
    %c0_12 = arith.constant 0 : index
    %30 = vector.load %arg5[%c0_10, %c0_11, %c0_12] : memref<2x3x128xf32, #tpu.memory_space<vmem>>, vector<2x3x128xf32>
    tpu.vector_store %arg5[%c0_10, %c0_11, %c0_12], %29 {strides = array<i32>} : memref<2x3x128xf32, #tpu.memory_space<vmem>>, vector<2x3x128xf32>,
    return
  }
  func.func @transform_0(%arg0: i32, %arg1: i32) -> (i32, i32) {
    %c0_i32 = arith.constant 0 : i32
    %c0_i32_0 = arith.constant 0 : i32
    return %arg0, %c0_i32 : i32, i32
  }
  func.func @transform_1(%arg0: i32, %arg1: i32) -> (i32, i32) {
    %c0_i32 = arith.constant 0 : i32
    %c0_i32_0 = arith.constant 0 : i32
    return %arg1, %c0_i32 : i32, i32
  }
  func.func @transform_2(%arg0: i32, %arg1: i32) -> (i32, i32) {
    %c0_i32 = arith.constant 0 : i32
    %c0_i32_0 = arith.constant 0 : i32
    %c0_i32_1 = arith.constant 0 : i32
    return %c0_i32, %c0_i32_0 : i32, i32
  }
  func.func @transform_3(%arg0: i32, %arg1: i32) -> (i32, i32, i32) {
    %c0_i32 = arith.constant 0 : i32
    %c0_i32_0 = arith.constant 0 : i32
    return %arg0, %arg1, %c0_i32 : i32, i32, i32
  }
}

</mosaic_0001>

<llo_original>
// kernel: tpu_custom_call.1
$region0: #{tpu_custom_call.1}
  #allocation0 [shape = 'u32[]', space=smem, size = 0x4, offset = 0x4, fixed_abs, tag = 'smem constant byte address 0x4 - core index']
  #allocation1 [shape = 'u32[144,128]{1,0:T(1,128)}', space=vmem, size = 0x12000, scoped, tag = 'internal scratch']
  %s0 = inlined_call_operand.hbm [shape: f32[2,128], index: 0, kind: input, shape index: {}]
  %s1 = inlined_call_operand.hbm [shape: f32[3,128], index: 1, kind: input, shape index: {}]
  %s2 = inlined_call_operand.vmem [shape: f32[1,128], index: 2, kind: input, shape index: {}]
  %s3 = inlined_call_operand.vmem [shape: f32[2,3,128], index: 3, kind: output, shape index: {}]
  %s4 = sld [smem:[#allocation0]]
  $region30: #{tpu_custom_call.1} parent=0
    _
  %s6 = ssub.s32 1, %s4
  %s7 = scalar_select 0, %s6, %s4
  $region1: #{tpu_custom_call.1} parent=0
    #allocation2 [shape = 'u8[1024]{0}', space=vmem, size = 0x400, scoped, tag = 'input window, operand 0, single buffered']
    #allocation3 [shape = 's32[1]{0}', space=sflag, size = 0x4, scoped, tag = 'scoped memory for tpu_custom_call.1']
    #allocation4 [shape = 'u8[2048]{0}', space=vmem, size = 0x800, scoped, tag = 'input window, operand 1, single buffered']
    #allocation5 [shape = 's32[1]{0}', space=sflag, size = 0x4, scoped, tag = 'scoped memory for tpu_custom_call.1']
    %8 = vsyncpa [#allocation3], 0
    %9 = vsyncpa [#allocation5], 0
    // Predicated region
    $region2: #{tpu_custom_call.1} parent=1 // pred_check
      _
    $region3: #{tpu_custom_call.1} parent=1 // pred_check_branch
      %11 = sbr.rel (0) target = $region5
    $region4: #{tpu_custom_call.1} parent=1 // pred_region
      %s13 = ssub.s32 32, 32
      %14 = vsyncadd [#allocation3], %s13
      %s16 = sshll.u32 [#allocation2], 4
      %s17 = int_to_ptr.vmem [resolvable:$true] %s16
      %19 = dma.hbm_to_vmem [thread:$0]  %s0, 32, %s17, [#allocation3]
    $region5: #{tpu_custom_call.1} parent=1 // pred_fallthru
      _
    // Predicated region
    $region6: #{tpu_custom_call.1} parent=1 // pred_check
      _
    $region7: #{tpu_custom_call.1} parent=1 // pred_check_branch
      %21 = sbr.rel (0) target = $region9
    $region8: #{tpu_custom_call.1} parent=1 // pred_region
      %s23 = ssub.s32 64, 64
      %24 = vsyncadd [#allocation5], %s23
      %s26 = sshll.u32 [#allocation4], 4
      %s27 = int_to_ptr.vmem [resolvable:$true] %s26
      %29 = dma.hbm_to_vmem [thread:$0]  %s1, 64, %s27, [#allocation5]
    $region9: #{tpu_custom_call.1} parent=1 // pred_fallthru
      _
    // Predicated region
    $region10: #{tpu_custom_call.1} parent=1 // pred_check
      _
    $region11: #{tpu_custom_call.1} parent=1 // pred_check_branch
      %31 = sbr.rel (0) target = $region13
    $region12: #{tpu_custom_call.1} parent=1 // pred_region
      _
    $region13: #{tpu_custom_call.1} parent=1 // pred_fallthru
      _
    // Predicated region
    $region14: #{tpu_custom_call.1} parent=1 // pred_check
      _
    $region15: #{tpu_custom_call.1} parent=1 // pred_check_branch
      %33 = sbr.rel (0) target = $region17
    $region16: #{tpu_custom_call.1} parent=1 // pred_region
      %34 = dma.done [#allocation3], 32
    $region17: #{tpu_custom_call.1} parent=1 // pred_fallthru
      _
    // Predicated region
    $region18: #{tpu_custom_call.1} parent=1 // pred_check
      _
    $region19: #{tpu_custom_call.1} parent=1 // pred_check_branch
      %36 = sbr.rel (0) target = $region21
    $region20: #{tpu_custom_call.1} parent=1 // pred_region
      %37 = dma.done [#allocation5], 64
    $region21: #{tpu_custom_call.1} parent=1 // pred_fallthru
      _
    %v38 = vld [vmem:[#allocation2] sm:$0x3]
    %v39 = vld [vmem:[#allocation4] sm:$0x7]
    %v40 = vld [vmem:[%s2] sm:$0x1]
    %vm41 = vcmp.gt.f32.partialorder %v40, 0.5
    %v42 = vmax.f32 %v39, 1.1920929e-07
    %v43 = vmin.f32 %v42, 0.9999999
    %v44 = vlog2.pop %v43
    %v45 = vmul.f32 %v44, 0.6931472
    %v46 = vsub.f32 0.0, %v43
    %v47 = vadd.f32 %v46, 1.0
    %v48 = vlog2.pop %v47
    %v49 = vmul.f32 %v48, 0.6931472
    %v50 = vmul.f32 -0.5, %v46
    %v51 = vadd.f32 %v50, 1.0
    %v52 = vmul.f32 %v51, %v46
    %v53 = vand.u32 2147483647, %v46
    %vm54 = vcmp.lt.f32.partialorder %v53, 0.0004427343
    %v55 = vsel %vm54, %v52, %v49
    %v58 = vunpack.c.l.s4 1966171168
    %v59 = vunpack.c.0.s8 %v58
    %v60 = vlaneseq
    %v61 = vshrl.u32 %v60, 7
    %v62 = vsub.s32 %v59, %v61
    %v63 = vrot.slane %v38, %v62
    %v64 = vcombine.high %v63, %v63
    %v66 = vunpack.c.l.s4 1966171168
    %v67 = vunpack.c.0.s8 %v66
    %v68 = vlaneseq
    %v69 = vshrl.u32 %v68, 7
    %v70 = vsub.s32 %v67, %v69
    %v71 = vrot.slane %v63, %v70
    %v73 = vunpack.c.l.s4 1966171168
    %v74 = vunpack.c.0.s8 %v73
    %v75 = vlaneseq
    %v76 = vshrl.u32 %v75, 7
    %v77 = vsub.s32 %v74, %v76
    %v78 = vrot.slane %v64, %v77
    %vm81 = vcmp.gt.f32.partialorder %v71, 0.5
    %vm82 = vcmp.gt.f32.partialorder %v78, 0.5
    %v83 = vsel %vm81, 1, 0
    %v84 = vsel %vm82, 1, 0
    %v85 = vlaneseq
    %v86 = vshrl.u32 %v85, 7
    %v87 = vsub.s32 0, %v86
    %v88 = vrot.slane %v83, %v87
    %v89 = vlaneseq
    %v90 = vshrl.u32 %v89, 7
    %v91 = vsub.s32 0, %v90
    %v92 = vrot.slane %v84, %v91
    %vm93 = vcmp.eq.s32.totalorder %v88, 1
    %vm94 = vcmp.eq.s32.totalorder %v92, 1
    %v95 = vsel %vm93, %v45, %v55
    %v96 = vsel %vm94, %v45, %v55
    %v97 = vsel %vm41, 1, 0
    %v98 = vlaneseq
    %v99 = vshrl.u32 %v98, 7
    %v100 = vsub.s32 0, %v99
    %v101 = vrot.slane %v97, %v100
    %vm102 = vcmp.eq.s32.totalorder %v101, 1
    %v103 = vsel %vm102, %v95, 0.0
    %v104 = vsel %vm102, %v96, 0.0
    %105 = vst [vmem:[%s3] sm:$0x7] %v103
    %106 = vst [vmem:[%s3 + $0x4] sm:$0x7] %v104
    // Predicated region
    $region22: #{tpu_custom_call.1} parent=1 // pred_check
      _
    $region23: #{tpu_custom_call.1} parent=1 // pred_check_branch
      %108 = sbr.rel (0) target = $region25
    $region24: #{tpu_custom_call.1} parent=1 // pred_region
      _
    $region25: #{tpu_custom_call.1} parent=1 // pred_fallthru
      _
    // Predicated region
    $region26: #{tpu_custom_call.1} parent=1 // pred_check
      _
    $region27: #{tpu_custom_call.1} parent=1 // pred_check_branch
      %110 = sbr.rel (0) target = $region29
    $region28: #{tpu_custom_call.1} parent=1 // pred_region
      _
    $region29: #{tpu_custom_call.1} parent=1 // pred_fallthru
      _
    %111 = vsyncpa [#allocation3], 1
    %112 = vsyncpa [#allocation5], 1

</llo_original>
